<compile_context>
chip_gen: v7x
topology: tpu7x:2x2x1
jax: 0.10.0
libtpu: 0.0.40
codegen_flags: <defaults>
</compile_context>

<pallas_src>
import functools

import jax
import jax.numpy as jnp
from jax import lax
from jax.experimental import pallas as pl
from jax.experimental.pallas import tpu as pltpu

# Conservative explicit VMEM budget: safe on v5e/v6e/v7x; retune per chip for
# production-size (H=768, FFN=3072, S=512) tiles.
_VMEM_LIMIT = 32 * 1024 * 1024


# ----------------------------- Pallas kernels ------------------------------ #

def _linear_kernel(x_ref, w_ref, b_ref, o_ref, *, activation):
    x = x_ref[...].astype(jnp.bfloat16)
    w = w_ref[...].astype(jnp.bfloat16)
    y = jnp.dot(x, w, preferred_element_type=jnp.float32)
    y = y + b_ref[...].astype(jnp.float32)
    if activation == "gelu":
        # TODO(synk): HF DistilBERT uses exact (erf) GELU; tanh approximation keeps
        # the lowering on the EUP and only deviates at the ~1e-3 level.
        y = jax.nn.gelu(y, approximate=True)
    o_ref[...] = y.astype(o_ref.dtype)


def pallas_linear(x, w, b, activation=None, tm=256, tn=512):
    """y = act(x @ w + b). x: [T, Din], w: [Din, Dout] (bf16 ok), b: [Dout]."""
    T, Din = x.shape
    Dout = w.shape[1]
    TM = T if T <= tm else tm                       # row tile (sublane axis)
    TN = Dout if (Dout % tn != 0) else min(Dout, tn)  # lane-dense output tile
    kern = functools.partial(_linear_kernel, activation=activation)
    return pl.pallas_call(
        kern,
        out_shape=jax.ShapeDtypeStruct((T, Dout), jnp.float32),
        grid=(pl.cdiv(T, TM), pl.cdiv(Dout, TN)),
        in_specs=[
            pl.BlockSpec((TM, Din), lambda i, j: (i, 0)),
            pl.BlockSpec((Din, TN), lambda i, j: (0, j)),
            pl.BlockSpec((1, TN), lambda i, j: (0, j)),
        ],
        out_specs=pl.BlockSpec((TM, TN), lambda i, j: (i, j)),
        compiler_params=pltpu.CompilerParams(
            dimension_semantics=("parallel", "parallel"),
            vmem_limit_bytes=_VMEM_LIMIT),
    )(x, w, b.reshape(1, Dout))


def _ln_math(x, g, b, eps):
    mu = jnp.mean(x, axis=-1, keepdims=True)
    var = jnp.mean((x - mu) * (x - mu), axis=-1, keepdims=True)
    return (x - mu) * lax.rsqrt(var + eps) * g + b


def _layernorm_kernel(x_ref, g_ref, b_ref, o_ref, *, eps):
    x = x_ref[...].astype(jnp.float32)
    o_ref[...] = _ln_math(x, g_ref[...], b_ref[...], eps).astype(o_ref.dtype)


def _add_layernorm_kernel(x_ref, r_ref, g_ref, b_ref, o_ref, *, eps):
    # Residual add fused into LayerNorm (removes a standalone HBM elementwise pass).
    x = x_ref[...].astype(jnp.float32) + r_ref[...].astype(jnp.float32)
    o_ref[...] = _ln_math(x, g_ref[...], b_ref[...], eps).astype(o_ref.dtype)


def pallas_layernorm(x, gamma, beta, residual=None, eps=1e-12, tm=256):
    T, H = x.shape
    TM = T if T <= tm else tm
    row_spec = pl.BlockSpec((TM, H), lambda i: (i, 0))
    vec_spec = pl.BlockSpec((1, H), lambda i: (0, 0))
    if residual is None:
        kern = functools.partial(_layernorm_kernel, eps=eps)
        in_specs = [row_spec, vec_spec, vec_spec]
        args = (x, gamma.reshape(1, H), beta.reshape(1, H))
    else:
        kern = functools.partial(_add_layernorm_kernel, eps=eps)
        in_specs = [row_spec, row_spec, vec_spec, vec_spec]
        args = (x, residual, gamma.reshape(1, H), beta.reshape(1, H))
    return pl.pallas_call(
        kern,
        out_shape=jax.ShapeDtypeStruct((T, H), jnp.float32),
        grid=(pl.cdiv(T, TM),),
        in_specs=in_specs,
        out_specs=row_spec,
        compiler_params=pltpu.CompilerParams(
            dimension_semantics=("parallel",),
            vmem_limit_bytes=_VMEM_LIMIT),
    )(*args)


def _attn_kernel(qkv_ref, m_ref, o_ref, *, n_heads, hidden):
    H = hidden
    dH = H // n_heads
    scale = 1.0 / float(dH) ** 0.5
    qkv = qkv_ref[...]                                  # [S, 3H] fused Q|K|V
    keep = m_ref[...] > 0.0                             # [1, S] key-padding mask
    neg = jnp.float32(-1e9)
    ctxs = []
    for h in range(n_heads):                            # static unroll over heads
        q = (qkv[:, h * dH:(h + 1) * dH].astype(jnp.float32) * scale
             ).astype(jnp.bfloat16)                     # fold scale into small q
        k = qkv[:, H + h * dH:H + (h + 1) * dH].astype(jnp.bfloat16)
        v = qkv[:, 2 * H + h * dH:2 * H + (h + 1) * dH].astype(jnp.bfloat16)
        # contract last dims directly -> no explicit k transpose (no XLU pass)
        s = lax.dot_general(q, k, (((1,), (1,)), ((), ())),
                            preferred_element_type=jnp.float32)      # [S, S]
        s = jnp.where(keep, s, neg)
        s = s - jnp.max(s, axis=-1, keepdims=True)
        p = jnp.exp(s)
        inv = pl.reciprocal(jnp.sum(p, axis=-1, keepdims=True), approx=True)
        p = (p * inv).astype(jnp.bfloat16)
        ctxs.append(jnp.dot(p, v, preferred_element_type=jnp.float32))
    # single lane-dense store of all heads (already in merged [S, H] layout)
    o_ref[...] = jnp.concatenate(ctxs, axis=-1).astype(o_ref.dtype)


def pallas_attention(qkv, mask, n_heads):
    """qkv: [B, S, 3H] (fused Q|K|V); mask: [B, S] (1 = keep, 0 = pad)."""
    B, S, H3 = qkv.shape
    H = H3 // 3
    kern = functools.partial(_attn_kernel, n_heads=n_heads, hidden=H)
    return pl.pallas_call(
        kern,
        out_shape=jax.ShapeDtypeStruct((B, S, H), jnp.float32),
        grid=(B,),
        in_specs=[
            pl.BlockSpec((None, S, H3), lambda b: (b, 0, 0)),
            pl.BlockSpec((None, 1, S), lambda b: (b, 0, 0)),
        ],
        out_specs=pl.BlockSpec((None, S, H), lambda b: (b, 0, 0)),
        compiler_params=pltpu.CompilerParams(
            dimension_semantics=("parallel",),
            vmem_limit_bytes=_VMEM_LIMIT),
    )(qkv, mask.astype(jnp.float32).reshape(B, 1, S))


def _ce_kernel(logits_ref, labels_ref, loss_ref, acc_ref, *, total_rows):
    i = pl.program_id(0)
    tm = logits_ref.shape[0]

    @pl.when(i == 0)
    def _():
        acc_ref[0] = jnp.float32(0.0)
        acc_ref[1] = jnp.float32(0.0)

    x = logits_ref[...].astype(jnp.float32)              # [TM, Lpad]
    labels = labels_ref[...]                             # [TM, 1] int32
    rows = lax.broadcasted_iota(jnp.int32, (tm, 1), 0) + i * tm
    in_bounds = rows < total_rows
    x = jnp.where(in_bounds, x, 0.0)                     # scrub ragged-edge rows
    m = jnp.max(x, axis=-1, keepdims=True)
    lse = jnp.log(jnp.sum(jnp.exp(x - m), axis=-1, keepdims=True)) + m
    cols = lax.broadcasted_iota(jnp.int32, x.shape, 1)
    picked = jnp.sum(jnp.where(cols == labels, x, 0.0), axis=-1, keepdims=True)
    valid = jnp.logical_and(labels != -100, in_bounds).astype(jnp.float32)
    acc_ref[0] = acc_ref[0] + jnp.sum((lse - picked) * valid)
    acc_ref[1] = acc_ref[1] + jnp.sum(valid)

    @pl.when(i == pl.num_programs(0) - 1)
    def _():
        loss_ref[0, 0] = acc_ref[0] / jnp.maximum(acc_ref[1], 1.0)


def pallas_cross_entropy(logits, labels):
    """Mean token CE (ignore_index=-100). logits: [T, Lpad] (pad cols at -1e9)."""
    T, L = logits.shape
    TM = T if T <= 512 else 512
    kern = functools.partial(_ce_kernel, total_rows=T)
    out = pl.pallas_call(
        kern,
        out_shape=jax.ShapeDtypeStruct((1, 1), jnp.float32),
        grid=(pl.cdiv(T, TM),),
        in_specs=[
            pl.BlockSpec((TM, L), lambda i: (i, 0)),
            pl.BlockSpec((TM, 1), lambda i: (i, 0)),
        ],
        out_specs=pl.BlockSpec(memory_space=pltpu.SMEM),
        scratch_shapes=[pltpu.SMEM((2,), jnp.float32)],
        compiler_params=pltpu.CompilerParams(
            dimension_semantics=("arbitrary",),
            vmem_limit_bytes=_VMEM_LIMIT),
    )(logits, labels.reshape(T, 1).astype(jnp.int32))
    return out[0, 0]


# --------------------------- model: DistilbertNER -------------------------- #

def init_params(key, *, vocab=100, max_pos=64, hidden=32, n_heads=4,
                ffn=64, n_layers=2, num_labels=5):
    def w_init(k, shape, dtype):
        return (0.02 * jax.random.normal(k, shape)).astype(dtype)

    l_pad = ((num_labels + 127) // 128) * 128          # lane-dense classifier / CE
    keys = iter(jax.random.split(key, 4 + 8 * n_layers))

    w_cls = w_init(next(keys), (hidden, num_labels), jnp.bfloat16)
    w_cls = jnp.pad(w_cls, ((0, 0), (0, l_pad - num_labels)))
    b_cls = jnp.concatenate([jnp.zeros((num_labels,), jnp.float32),
                             jnp.full((l_pad - num_labels,), -1e9, jnp.float32)])

    p = {
        "n_heads": n_heads,
        "num_labels": num_labels,
        "word_emb": w_init(next(keys), (vocab, hidden), jnp.float32),
        "pos_emb": w_init(next(keys), (max_pos, hidden), jnp.float32),
        "emb_ln_g": jnp.ones((hidden,), jnp.float32),
        "emb_ln_b": jnp.zeros((hidden,), jnp.float32),
        "w_cls": w_cls,
        "b_cls": b_cls,
        "layers": [],
    }
    for _ in range(n_layers):
        wq = w_init(next(keys), (hidden, hidden), jnp.bfloat16)
        wk = w_init(next(keys), (hidden, hidden), jnp.bfloat16)
        wv = w_init(next(keys), (hidden, hidden), jnp.bfloat16)
        lyr = {
            # fused Q|K|V projection: one [H, 3H] matmul per layer
            "w_qkv": jnp.concatenate([wq, wk, wv], axis=1),
            "b_qkv": jnp.zeros((3 * hidden,), jnp.float32),
            "wo": w_init(next(keys), (hidden, hidden), jnp.bfloat16),
            "bo": jnp.zeros((hidden,), jnp.float32),
            "sa_ln_g": jnp.ones((hidden,), jnp.float32),
            "sa_ln_b": jnp.zeros((hidden,), jnp.float32),
            "w1": w_init(next(keys), (hidden, ffn), jnp.bfloat16),
            "b1": jnp.zeros((ffn,), jnp.float32),
            "w2": w_init(next(keys), (ffn, hidden), jnp.bfloat16),
            "b2": jnp.zeros((hidden,), jnp.float32),
            "out_ln_g": jnp.ones((hidden,), jnp.float32),
            "out_ln_b": jnp.zeros((hidden,), jnp.float32),
        }
        p["layers"].append(lyr)
    return p


def distilbert_ner_forward(params, input_ids, attention_mask, labels=None):
    """Mirrors DistilbertNER.forward: returns logits, or (loss, logits) if labels."""
    B, S = input_ids.shape
    H = params["word_emb"].shape[1]
    nH = params["n_heads"]
    L = params["num_labels"]

    # Embeddings (gather is glue; LayerNorm runs in Pallas).
    x = jnp.take(params["word_emb"], input_ids, axis=0)           # [B, S, H]
    pos = jnp.take(params["pos_emb"], jnp.arange(S), axis=0)      # [S, H]
    x = (x + pos[None, :, :]).reshape(B * S, H)
    x = pallas_layernorm(x, params["emb_ln_g"], params["emb_ln_b"])
    # TODO(synk): dropout layers are identity here (inference semantics).

    for lyr in params["layers"]:
        qkv = pallas_linear(x, lyr["w_qkv"], lyr["b_qkv"])        # [B*S, 3H] fused
        ctx = pallas_attention(qkv.reshape(B, S, 3 * H), attention_mask, nH)
        attn_out = pallas_linear(ctx.reshape(B * S, H), lyr["wo"], lyr["bo"])
        x = pallas_layernorm(attn_out, lyr["sa_ln_g"], lyr["sa_ln_b"], residual=x)
        h = pallas_linear(x, lyr["w1"], lyr["b1"], activation="gelu")
        h = pallas_linear(h, lyr["w2"], lyr["b2"])
        x = pallas_layernorm(h, lyr["out_ln_g"], lyr["out_ln_b"], residual=x)

    logits_pad = pallas_linear(x, params["w_cls"], params["b_cls"])  # [B*S, Lpad]
    logits = logits_pad[:, :L].reshape(B, S, L)

    if labels is None:
        return logits
    loss = pallas_cross_entropy(logits_pad, labels.reshape(B * S))
    return loss, logits


# ---------------------------------- main ----------------------------------- #

if __name__ == "__main__":
    B, S = 2, 8
    VOCAB, NUM_LABELS = 100, 5

    key = jax.random.PRNGKey(0)
    k_ids, k_lab, k_params = jax.random.split(key, 3)

    input_ids = jax.random.randint(k_ids, (B, S), 0, VOCAB, dtype=jnp.int32)
    attention_mask = jnp.ones((B, S), dtype=jnp.int32).at[:, -2:].set(0)   # pad tail
    labels = jax.random.randint(k_lab, (B, S), 0, NUM_LABELS, dtype=jnp.int32)
    labels = jnp.where(attention_mask == 1, labels, -100)                  # ignore pads

    params = init_params(k_params, vocab=VOCAB, max_pos=64, hidden=32,
                         n_heads=4, ffn=64, n_layers=2, num_labels=NUM_LABELS)

    # labels=None path (returns logits)
    logits = distilbert_ner_forward(params, input_ids, attention_mask)
    jax.block_until_ready(logits)
    assert logits.shape == (B, S, NUM_LABELS)

    # labels path (returns (loss, logits))
    loss, logits2 = distilbert_ner_forward(params, input_ids, attention_mask, labels)
    jax.block_until_ready((loss, logits2))
    assert logits2.shape == (B, S, NUM_LABELS)
    assert bool(jnp.isfinite(loss))

    print("KERNEL_OK")
</pallas_src>

<mosaic_0001>
module attributes {stable_mosaic.version = 11 : i64} {
  func.func @_layernorm_kernel(%arg0: i32, %arg1: memref<16x32xf32, #tpu.memory_space<vmem>>, %arg2: memref<1x32xf32, #tpu.memory_space<vmem>>, %arg3: memref<1x32xf32, #tpu.memory_space<vmem>>, %arg4: memref<16x32xf32, #tpu.memory_space<vmem>>) attributes {dimension_semantics = [#tpu.dimension_semantics<parallel>], iteration_bounds = array<i64: 1>, scalar_prefetch = 0 : i64, scratch_operands = 0 : i64, tpu.core_type = #tpu.core_type<tc>, window_params = [{transform_indices = @transform_0, window_bounds = array<i64: 16, 32>}, {pipeline_mode = #tpu.pipeline_mode<synchronous>, transform_indices = @transform_1, window_bounds = array<i64: 1, 32>}, {pipeline_mode = #tpu.pipeline_mode<synchronous>, transform_indices = @transform_2, window_bounds = array<i64: 1, 32>}, {transform_indices = @transform_3, window_bounds = array<i64: 16, 32>}]} {
    %c0 = arith.constant 0 : index
    %c0_0 = arith.constant 0 : index
    %0 = vector.load %arg1[%c0, %c0_0] : memref<16x32xf32, #tpu.memory_space<vmem>>, vector<16x32xf32>
    %c0_1 = arith.constant 0 : index
    %c0_2 = arith.constant 0 : index
    %1 = vector.load %arg2[%c0_1, %c0_2] : memref<1x32xf32, #tpu.memory_space<vmem>>, vector<1x32xf32>
    %c0_3 = arith.constant 0 : index
    %c0_4 = arith.constant 0 : index
    %2 = vector.load %arg3[%c0_3, %c0_4] : memref<1x32xf32, #tpu.memory_space<vmem>>, vector<1x32xf32>
    %cst = arith.constant dense<0.000000e+00> : vector<16xf32>
    %3 = vector.multi_reduction <add>, %0, %cst [1] : vector<16x32xf32> to vector<16xf32>
    %4 = vector.shape_cast %3 : vector<16xf32> to vector<16x1xf32>
    %cst_5 = arith.constant 3.200000e+01 : f32
    %5 = vector.broadcast %cst_5 : f32 to vector<16x1xf32>
    %6 = arith.divf %4, %5 : vector<16x1xf32>
    %7 = vector.broadcast %6 : vector<16x1xf32> to vector<16x32xf32>
    %8 = arith.subf %0, %7 : vector<16x32xf32>
    %9 = vector.broadcast %6 : vector<16x1xf32> to vector<16x32xf32>
    %10 = arith.subf %0, %9 : vector<16x32xf32>
    %11 = arith.mulf %8, %10 : vector<16x32xf32>
    %cst_6 = arith.constant dense<0.000000e+00> : vector<16xf32>
    %12 = vector.multi_reduction <add>, %11, %cst_6 [1] : vector<16x32xf32> to vector<16xf32>
    %13 = vector.shape_cast %12 : vector<16xf32> to vector<16x1xf32>
    %cst_7 = arith.constant 3.200000e+01 : f32
    %14 = vector.broadcast %cst_7 : f32 to vector<16x1xf32>
    %15 = arith.divf %13, %14 : vector<16x1xf32>
    %16 = vector.broadcast %6 : vector<16x1xf32> to vector<16x32xf32>
    %17 = arith.subf %0, %16 : vector<16x32xf32>
    %cst_8 = arith.constant 9.99999996E-13 : f32
    %18 = vector.broadcast %cst_8 : f32 to vector<16x1xf32>
    %19 = arith.addf %15, %18 : vector<16x1xf32>
    %20 = math.rsqrt %19 : vector<16x1xf32>
    %21 = vector.broadcast %20 : vector<16x1xf32> to vector<16x32xf32>
    %22 = arith.mulf %17, %21 : vector<16x32xf32>
    %23 = vector.broadcast %1 : vector<1x32xf32> to vector<16x32xf32>
    %24 = arith.mulf %22, %23 : vector<16x32xf32>
    %25 = vector.broadcast %2 : vector<1x32xf32> to vector<16x32xf32>
    %26 = arith.addf %24, %25 : vector<16x32xf32>
    %c0_9 = arith.constant 0 : index
    %c0_10 = arith.constant 0 : index
    %27 = vector.load %arg4[%c0_9, %c0_10] : memref<16x32xf32, #tpu.memory_space<vmem>>, vector<16x32xf32>
    tpu.vector_store %arg4[%c0_9, %c0_10], %26 {strides = array<i32>} : memref<16x32xf32, #tpu.memory_space<vmem>>, vector<16x32xf32>,
    return
  }
  func.func @transform_0(%arg0: i32) -> (i32, i32) {
    %c0_i32 = arith.constant 0 : i32
    %c0_i32_0 = arith.constant 0 : i32
    return %arg0, %c0_i32 : i32, i32
  }
  func.func @transform_1(%arg0: i32) -> (i32, i32) {
    %c0_i32 = arith.constant 0 : i32
    %c0_i32_0 = arith.constant 0 : i32
    %c0_i32_1 = arith.constant 0 : i32
    return %c0_i32, %c0_i32_0 : i32, i32
  }
  func.func @transform_2(%arg0: i32) -> (i32, i32) {
    %c0_i32 = arith.constant 0 : i32
    %c0_i32_0 = arith.constant 0 : i32
    %c0_i32_1 = arith.constant 0 : i32
    return %c0_i32, %c0_i32_0 : i32, i32
  }
  func.func @transform_3(%arg0: i32) -> (i32, i32) {
    %c0_i32 = arith.constant 0 : i32
    %c0_i32_0 = arith.constant 0 : i32
    return %arg0, %c0_i32 : i32, i32
  }
}

</mosaic_0001>

<llo_original>
// kernel: tpu_custom_call.1
$region0: #{tpu_custom_call.1}
  #allocation0 [shape = 'u32[]', space=smem, size = 0x4, offset = 0x4, fixed_abs, tag = 'smem constant byte address 0x4 - core index']
  #allocation1 [shape = 'u32[144,128]{1,0:T(1,128)}', space=vmem, size = 0x12000, scoped, tag = 'internal scratch']
  %s0 = inlined_call_operand.hbm [shape: f32[16,32], index: 0, kind: input, shape index: {}]
  %s1 = inlined_call_operand.vmem [shape: f32[1,32], index: 1, kind: input, shape index: {}]
  %s2 = inlined_call_operand.vmem [shape: f32[1,32], index: 2, kind: input, shape index: {}]
  %s3 = inlined_call_operand.hbm [shape: f32[16,32], index: 3, kind: output, shape index: {}]
  %s4 = sld [smem:[#allocation0]]
  $region26: #{tpu_custom_call.1} parent=0
    _
  %s6 = ssub.s32 1, %s4
  %s7 = scalar_select 0, %s6, %s4
  $region1: #{tpu_custom_call.1} parent=0
    #allocation2 [shape = 'u8[8192]{0}', space=vmem, size = 0x2000, scoped, tag = 'input window, operand 0, single buffered']
    #allocation3 [shape = 's32[1]{0}', space=sflag, size = 0x4, scoped, tag = 'scoped memory for tpu_custom_call.1']
    #allocation4 [shape = 's32[1]{0}', space=sflag, size = 0x4, scoped, tag = 'scoped memory for tpu_custom_call.1']
    #allocation5 [shape = 'u8[8192]{0}', space=vmem, size = 0x2000, scoped, tag = 'output window, operand 0, single buffered']
    %8 = vsyncpa [#allocation3], 0
    %9 = vsyncpa [#allocation4], 0
    // Predicated region
    $region2: #{tpu_custom_call.1} parent=1 // pred_check
      _
    $region3: #{tpu_custom_call.1} parent=1 // pred_check_branch
      %11 = sbr.rel (0) target = $region5
    $region4: #{tpu_custom_call.1} parent=1 // pred_region
      %s13 = ssub.s32 256, 256
      %14 = vsyncadd [#allocation3], %s13
      %s15 = sshll.u32 [#allocation2], 4
      %s16 = int_to_ptr.vmem [resolvable:$true] %s15
      %21 = dma.hbm_to_vmem [thread:$0]  %s0, 256, %s16, [#allocation3], 128, 128, 8
    $region5: #{tpu_custom_call.1} parent=1 // pred_fallthru
      _
    // Predicated region
    $region6: #{tpu_custom_call.1} parent=1 // pred_check
      _
    $region7: #{tpu_custom_call.1} parent=1 // pred_check_branch
      %23 = sbr.rel (0) target = $region9
    $region8: #{tpu_custom_call.1} parent=1 // pred_region
      _
    $region9: #{tpu_custom_call.1} parent=1 // pred_fallthru
      _
    // Predicated region
    $region10: #{tpu_custom_call.1} parent=1 // pred_check
      _
    $region11: #{tpu_custom_call.1} parent=1 // pred_check_branch
      %25 = sbr.rel (0) target = $region13
    $region12: #{tpu_custom_call.1} parent=1 // pred_region
      _
    $region13: #{tpu_custom_call.1} parent=1 // pred_fallthru
      _
    // Predicated region
    $region14: #{tpu_custom_call.1} parent=1 // pred_check
      _
    $region15: #{tpu_custom_call.1} parent=1 // pred_check_branch
      %27 = sbr.rel (0) target = $region17
    $region16: #{tpu_custom_call.1} parent=1 // pred_region
      %28 = dma.done [#allocation3], 256
    $region17: #{tpu_custom_call.1} parent=1 // pred_fallthru
      _
    %v29 = vld [vmem:[#allocation2] sm:$0xff]
    %v30 = vld [vmem:[#allocation2 + $0x8] sm:$0xff]
    %v31 = vld [vmem:[%s1] sm:$0x1]
    %v32 = vld [vmem:[%s2] sm:$0x1]
    %vm33 = vcmask 261120
    %v34 = vsel %vm33, %v29, 0.0
    %35 = vadd.xlane.f32.xlu0 %v34
    %v36 = vpop.xlane.xlu0 %35
    %v37 = vsel %vm33, %v30, 0.0
    %38 = vadd.xlane.f32.xlu0 %v37
    %v39 = vpop.xlane.xlu0 %38
    %v40 = vrcp.pop 32.0
    %v41 = vmul.f32 %v36, %v40
    %v42 = vmul.f32 %v39, %v40
    %v43 = vsub.f32 %v29, %v41
    %v44 = vsub.f32 %v30, %v42
    %v45 = vmul.f32 %v43, %v43
    %v46 = vmul.f32 %v44, %v44
    %v47 = vsel %vm33, %v45, 0.0
    %48 = vadd.xlane.f32.xlu0 %v47
    %v49 = vpop.xlane.xlu0 %48
    %v50 = vsel %vm33, %v46, 0.0
    %51 = vadd.xlane.f32.xlu0 %v50
    %v52 = vpop.xlane.xlu0 %51
    %v53 = vmul.f32 %v49, %v40
    %v54 = vmul.f32 %v52, %v40
    %v55 = vadd.f32 %v53, 1e-12
    %v56 = vadd.f32 %v54, 1e-12
    %v57 = vrsqrt.pop %v55
    %v58 = vrsqrt.pop %v56
    %v59 = vmul.f32 %v43, %v57
    %v60 = vmul.f32 %v44, %v58
    %v62 = vlaneseq
    %v63 = vshrl.u32 %v62, 7
    %v64 = vsub.s32 0, %v63
    %v65 = vrot.slane %v31, %v64
    %v67 = vmul.f32 %v59, %v65
    %v68 = vmul.f32 %v60, %v65
    %v70 = vlaneseq
    %v71 = vshrl.u32 %v70, 7
    %v72 = vsub.s32 0, %v71
    %v73 = vrot.slane %v32, %v72
    %v75 = vadd.f32 %v67, %v73
    %v76 = vadd.f32 %v68, %v73
    %77 = vst.msk [vmem:[#allocation5] sm:$0xff] %vm33, %v75
    %78 = vst.msk [vmem:[#allocation5 + $0x8] sm:$0xff] %vm33, %v76
    // Predicated region
    $region18: #{tpu_custom_call.1} parent=1 // pred_check
      _
    $region19: #{tpu_custom_call.1} parent=1 // pred_check_branch
      %80 = sbr.rel (0) target = $region21
    $region20: #{tpu_custom_call.1} parent=1 // pred_region
      %s82 = ssub.s32 256, 256
      %83 = vsyncadd [#allocation4], %s82
      %s84 = sshll.u32 [#allocation5], 4
      %s85 = int_to_ptr.vmem [resolvable:$true] %s84
      %90 = dma.vmem_to_hbm [thread:$0]  %s85, 256, %s3, [#allocation4], 128, 128, 8
    $region21: #{tpu_custom_call.1} parent=1 // pred_fallthru
      _
    // Predicated region
    $region22: #{tpu_custom_call.1} parent=1 // pred_check
      _
    $region23: #{tpu_custom_call.1} parent=1 // pred_check_branch
      %92 = sbr.rel (0) target = $region25
    $region24: #{tpu_custom_call.1} parent=1 // pred_region
      %93 = dma.done [#allocation4], 256
    $region25: #{tpu_custom_call.1} parent=1 // pred_fallthru
      _
    %94 = vsyncpa [#allocation3], 1
    %95 = vsyncpa [#allocation4], 1

</llo_original>
